<compile_context>
chip_gen: v7x
topology: tpu7x:2x2x1
jax: 0.10.0
libtpu: 0.0.40
codegen_flags: <defaults>
</compile_context>

<pallas_src>
import functools

import jax
import jax.numpy as jnp
from jax.experimental import pallas as pl
from jax.experimental.pallas import tpu as pltpu


def _focal_loss_kernel(logits_ref, targets_ref, partial_ref, *, alpha, gamma,
                       n_rows, tile_rows):
    i = pl.program_id(0)

    # Load one row-tile; upcast AFTER the load so bf16 inputs stream cheaply.
    x = logits_ref[...].astype(jnp.float32)            # (TILE_ROWS, C)
    t = targets_ref[...]                                # (TILE_ROWS, 1) int32

    # Numerically-stable softmax pieces; exp(x - m) is computed ONCE and
    # reused for both the denominator and pt (no second exp per row).
    m = jnp.max(x, axis=-1, keepdims=True)              # (TILE_ROWS, 1)
    e = jnp.exp(x - m)                                   # (TILE_ROWS, C)
    s = jnp.sum(e, axis=-1, keepdims=True)               # (TILE_ROWS, 1)

    # Gather the target-class logit / exp via a lane-index compare+select
    # (no dynamic gather).
    lane = jax.lax.broadcasted_iota(jnp.int32, x.shape, dimension=1)
    is_t = lane == t
    logit_t = jnp.sum(jnp.where(is_t, x, 0.0), axis=-1, keepdims=True)
    e_t = jnp.sum(jnp.where(is_t, e, 0.0), axis=-1, keepdims=True)

    ce = jnp.log(s) + m - logit_t                        # per-row cross entropy
    pt = e_t / s                                         # == exp(-ce), reuses e
    one_minus_pt = jnp.maximum(1.0 - pt, 0.0)            # guard float-gamma NaN
    loss = alpha * (one_minus_pt ** gamma) * ce          # per-row focal loss

    # Mask rows of the (possibly partial) last tile that lie past N.
    row = i * tile_rows + jax.lax.broadcasted_iota(jnp.int32, loss.shape,
                                                   dimension=0)
    loss = jnp.where(row < n_rows, loss, 0.0)

    # One lane-dense (8,128) = 1-vreg store per tile; wrapper reads [i, 0, 0].
    tile_sum = jnp.sum(loss)
    partial_ref[...] = jnp.broadcast_to(tile_sum, partial_ref.shape).astype(
        jnp.float32)


def _vmem_budget():
    """Generation-aware (vmem_limit_bytes, per-input-buffer tile budget)."""
    try:
        cap = int(pltpu.get_tpu_info().vmem_capacity_bytes)
    except Exception:  # pragma: no cover - conservative fallback (v7x size)
        cap = 64 * 1024 * 1024
    # Leave headroom for the output block, targets buffers and internal
    # scratch; split the remainder across the two pipeline buffers of the
    # logits input.  v7x (64 MiB/TC): limit 48 MiB, 8 MiB per buffer.
    # v5e/v6e (128 MiB):              limit 96 MiB, 16 MiB per buffer.
    vmem_limit = min((cap * 3) // 4, 96 * 1024 * 1024)
    per_buffer = min(vmem_limit // 6, 16 * 1024 * 1024)
    return vmem_limit, per_buffer


def _choose_tile_rows(n_rows, n_classes, itemsize, budget_bytes):
    # VMEM pads the lane (last) dim to a multiple of 128 -- account for it so
    # small-C inputs do not silently overshoot the budget by up to 4x.
    c_pad = ((n_classes + 127) // 128) * 128
    bytes_per_row = max(1, c_pad * itemsize)
    tn = budget_bytes // bytes_per_row
    tn = (tn // 8) * 8                     # multiple of 8 sublanes
    tn = max(tn, 8)
    n_pad8 = ((n_rows + 7) // 8) * 8       # no point tiling larger than N
    return max(8, min(tn, n_pad8))


def focal_loss(logits, targets, alpha=1.0, gamma=2, reduction="mean"):
    """Pallas TPU implementation of FocalLoss.forward (reduction='mean')."""
    assert reduction == "mean", "only the default reduction='mean' is implemented"
    n, c = logits.shape
    targets_2d = targets.astype(jnp.int32).reshape(n, 1)

    itemsize = jnp.dtype(logits.dtype).itemsize
    vmem_limit_bytes, per_buffer_budget = _vmem_budget()
    tile_rows = _choose_tile_rows(n, c, itemsize, per_buffer_budget)
    num_tiles = pl.cdiv(n, tile_rows)

    # Integer gamma -> cheap repeated-multiply power; float gamma -> pow.
    g = float(gamma)
    gamma_static = int(g) if g == int(g) else g

    kernel = functools.partial(
        _focal_loss_kernel, alpha=float(alpha), gamma=gamma_static,
        n_rows=n, tile_rows=tile_rows)

    cost = pl.CostEstimate(
        flops=6 * n * c,
        transcendentals=n * c + n,
        bytes_accessed=n * c * itemsize + n * 4 + num_tiles * 8 * 128 * 4,
    )

    partial = pl.pallas_call(
        kernel,
        out_shape=jax.ShapeDtypeStruct((num_tiles, 8, 128), jnp.float32),
        grid_spec=pltpu.PrefetchScalarGridSpec(
            num_scalar_prefetch=0,
            grid=(num_tiles,),
            in_specs=[
                pl.BlockSpec((tile_rows, c), lambda i: (i, 0)),   # logits
                pl.BlockSpec((tile_rows, 1), lambda i: (i, 0)),   # targets
            ],
            out_specs=pl.BlockSpec((1, 8, 128), lambda i: (i, 0, 0)),
        ),
        compiler_params=pltpu.CompilerParams(
            dimension_semantics=("parallel",),
            vmem_limit_bytes=vmem_limit_bytes,
        ),
        cost_estimate=cost,
    )(logits, targets_2d)

    # reduction='mean': tiny final reduce over per-tile partial sums in JAX.
    return jnp.sum(partial[:, 0, 0]) / jnp.float32(n)


def _reference_focal_loss(logits, targets, alpha=1.0, gamma=2):
    # Pure-JAX reference mirroring the PyTorch module, for sanity checking.
    logits = logits.astype(jnp.float32)
    lse = jax.nn.logsumexp(logits, axis=-1)
    ce = lse - jnp.take_along_axis(logits, targets[:, None], axis=-1)[:, 0]
    pt = jnp.exp(-ce)
    loss = alpha * ((1.0 - pt) ** gamma) * ce
    return loss.mean()


if __name__ == "__main__":
    key = jax.random.PRNGKey(0)
    k1, k2, k3, k4 = jax.random.split(key, 4)

    # Small primary shapes: batch=8 rows, 32 classes (single-tile path).
    N, C = 8, 32
    logits = jax.random.normal(k1, (N, C), dtype=jnp.float32)
    targets = jax.random.randint(k2, (N,), 0, C, dtype=jnp.int32)
    out = jax.block_until_ready(focal_loss(logits, targets, alpha=1.0, gamma=2))
    ref = _reference_focal_loss(logits, targets, alpha=1.0, gamma=2)
    assert jnp.allclose(out, ref, rtol=1e-5, atol=1e-5), (out, ref)

    # Multi-tile path (grid > 1, partial last tile masked).  With the byte-
    # based tile sizing this stays multi-tile only for small budgets, so force
    # the issue by checking a moderately large N with non-multiple-of-8 rows.
    N2, C2 = 1037, 96
    logits2 = jax.random.normal(k3, (N2, C2), dtype=jnp.float32)
    targets2 = jax.random.randint(k4, (N2,), 0, C2, dtype=jnp.int32)
    out2 = jax.block_until_ready(focal_loss(logits2, targets2, alpha=1.0, gamma=2))
    ref2 = _reference_focal_loss(logits2, targets2, alpha=1.0, gamma=2)
    assert jnp.allclose(out2, ref2, rtol=1e-4, atol=1e-5), (out2, ref2)

    print("KERNEL_OK")
</pallas_src>

<mosaic_0001>
module attributes {stable_mosaic.version = 11 : i64} {
  func.func @_focal_loss_kernel(%arg0: i32, %arg1: memref<8x32xf32, #tpu.memory_space<vmem>>, %arg2: memref<8x1xi32, #tpu.memory_space<vmem>>, %arg3: memref<1x8x128xf32, #tpu.memory_space<vmem>>) attributes {dimension_semantics = [#tpu.dimension_semantics<parallel>], iteration_bounds = array<i64: 1>, scalar_prefetch = 0 : i64, scratch_operands = 0 : i64, tpu.core_type = #tpu.core_type<tc>, window_params = [{transform_indices = @transform_0, window_bounds = array<i64: 8, 32>}, {transform_indices = @transform_1, window_bounds = array<i64: 8, 1>}, {transform_indices = @transform_2, window_bounds = array<i64: 1, 8, 128>}]} {
    %c0 = arith.constant 0 : index
    %c0_0 = arith.constant 0 : index
    %0 = vector.load %arg1[%c0, %c0_0] : memref<8x32xf32, #tpu.memory_space<vmem>>, vector<8x32xf32>
    %c0_1 = arith.constant 0 : index
    %c0_2 = arith.constant 0 : index
    %1 = vector.load %arg2[%c0_1, %c0_2] : memref<8x1xi32, #tpu.memory_space<vmem>>, vector<8x1xi32>
    %cst = arith.constant dense<0xFF800000> : vector<8xf32>
    %2 = vector.multi_reduction <maximumf>, %0, %cst [1] : vector<8x32xf32> to vector<8xf32>
    %3 = vector.shape_cast %2 : vector<8xf32> to vector<8x1xf32>
    %4 = vector.broadcast %3 : vector<8x1xf32> to vector<8x32xf32>
    %5 = arith.subf %0, %4 : vector<8x32xf32>
    %6 = math.exp %5 : vector<8x32xf32>
    %cst_3 = arith.constant dense<0.000000e+00> : vector<8xf32>
    %7 = vector.multi_reduction <add>, %6, %cst_3 [1] : vector<8x32xf32> to vector<8xf32>
    %8 = vector.shape_cast %7 : vector<8xf32> to vector<8x1xf32>
    %9 = tpu.iota {dimensions = array<i32: 1>} : vector<8x32xi32>
    %10 = vector.broadcast %1 : vector<8x1xi32> to vector<8x32xi32>
    %11 = arith.cmpi eq, %9, %10 : vector<8x32xi32>
    %cst_4 = arith.constant 0.000000e+00 : f32
    %12 = vector.broadcast %cst_4 : f32 to vector<8x32xf32>
    %13 = arith.select %11, %0, %12 : vector<8x32xi1>, vector<8x32xf32>
    %cst_5 = arith.constant dense<0.000000e+00> : vector<8xf32>
    %14 = vector.multi_reduction <add>, %13, %cst_5 [1] : vector<8x32xf32> to vector<8xf32>
    %15 = vector.shape_cast %14 : vector<8xf32> to vector<8x1xf32>
    %cst_6 = arith.constant 0.000000e+00 : f32
    %16 = vector.broadcast %cst_6 : f32 to vector<8x32xf32>
    %17 = arith.select %11, %6, %16 : vector<8x32xi1>, vector<8x32xf32>
    %cst_7 = arith.constant dense<0.000000e+00> : vector<8xf32>
    %18 = vector.multi_reduction <add>, %17, %cst_7 [1] : vector<8x32xf32> to vector<8xf32>
    %19 = vector.shape_cast %18 : vector<8xf32> to vector<8x1xf32>
    %20 = math.log %8 : vector<8x1xf32>
    %21 = arith.addf %20, %3 : vector<8x1xf32>
    %22 = arith.subf %21, %15 : vector<8x1xf32>
    %23 = arith.divf %19, %8 : vector<8x1xf32>
    %cst_8 = arith.constant 1.000000e+00 : f32
    %24 = vector.broadcast %cst_8 : f32 to vector<8x1xf32>
    %25 = arith.subf %24, %23 : vector<8x1xf32>
    %cst_9 = arith.constant 0.000000e+00 : f32
    %26 = vector.broadcast %cst_9 : f32 to vector<8x1xf32>
    %27 = arith.maximumf %25, %26 : vector<8x1xf32>
    %28 = arith.mulf %27, %27 : vector<8x1xf32>
    %cst_10 = arith.constant 1.000000e+00 : f32
    %29 = vector.broadcast %cst_10 : f32 to vector<8x1xf32>
    %30 = arith.mulf %29, %28 : vector<8x1xf32>
    %31 = arith.mulf %30, %22 : vector<8x1xf32>
    %c8_i32 = arith.constant 8 : i32
    %32 = arith.muli %arg0, %c8_i32 : i32
    %33 = tpu.iota {dimensions = array<i32: 0>} : vector<8x1xi32>
    %34 = vector.broadcast %32 : i32 to vector<8x1xi32>
    %35 = arith.addi %34, %33 : vector<8x1xi32>
    %c8_i32_11 = arith.constant 8 : i32
    %36 = vector.broadcast %c8_i32_11 : i32 to vector<8x1xi32>
    %37 = arith.cmpi slt, %35, %36 : vector<8x1xi32>
    %cst_12 = arith.constant 0.000000e+00 : f32
    %38 = vector.broadcast %cst_12 : f32 to vector<8x1xf32>
    %39 = arith.select %37, %31, %38 : vector<8x1xi1>, vector<8x1xf32>
    %40 = vector.shape_cast %39 : vector<8x1xf32> to vector<1x8x1xf32>
    %cst_13 = arith.constant dense<0.000000e+00> : vector<1xf32>
    %41 = vector.multi_reduction <add>, %40, %cst_13 [1, 2] : vector<1x8x1xf32> to vector<1xf32>
    %42 = vector.shape_cast %41 : vector<1xf32> to vector<1x1x1xf32>
    %43 = vector.extract %42[0, 0, 0] : f32 from vector<1x1x1xf32>
    %44 = vector.broadcast %43 : f32 to vector<1x8x128xf32>
    %c0_14 = arith.constant 0 : index
    %c0_15 = arith.constant 0 : index
    %c0_16 = arith.constant 0 : index
    %45 = vector.load %arg3[%c0_14, %c0_15, %c0_16] : memref<1x8x128xf32, #tpu.memory_space<vmem>>, vector<1x8x128xf32>
    tpu.vector_store %arg3[%c0_14, %c0_15, %c0_16], %44 {strides = array<i32>} : memref<1x8x128xf32, #tpu.memory_space<vmem>>, vector<1x8x128xf32>,
    return
  }
  func.func @transform_0(%arg0: i32) -> (i32, i32) {
    %c0_i32 = arith.constant 0 : i32
    %c0_i32_0 = arith.constant 0 : i32
    return %arg0, %c0_i32 : i32, i32
  }
  func.func @transform_1(%arg0: i32) -> (i32, i32) {
    %c0_i32 = arith.constant 0 : i32
    %c0_i32_0 = arith.constant 0 : i32
    return %arg0, %c0_i32 : i32, i32
  }
  func.func @transform_2(%arg0: i32) -> (i32, i32, i32) {
    %c0_i32 = arith.constant 0 : i32
    %c0_i32_0 = arith.constant 0 : i32
    %c0_i32_1 = arith.constant 0 : i32
    return %arg0, %c0_i32, %c0_i32_0 : i32, i32, i32
  }
}

</mosaic_0001>

<llo_original>
// kernel: tpu_custom_call.1
$region0: #{tpu_custom_call.1}
  #allocation0 [shape = 'u32[]', space=smem, size = 0x4, offset = 0x4, fixed_abs, tag = 'smem constant byte address 0x4 - core index']
  #allocation1 [shape = 'u32[144,128]{1,0:T(1,128)}', space=vmem, size = 0x12000, scoped, tag = 'internal scratch']
  %s0 = inlined_call_operand.vmem [shape: f32[8,32], index: 0, kind: input, shape index: {}]
  %s1 = inlined_call_operand.vmem [shape: s32[8,1], index: 1, kind: input, shape index: {}]
  %s2 = inlined_call_operand.hbm [shape: f32[1,8,128], index: 2, kind: output, shape index: {}]
  %s3 = sld [smem:[#allocation0]]
  $region18: #{tpu_custom_call.1} parent=0
    _
  %s5 = ssub.s32 1, %s3
  %s6 = scalar_select 0, %s5, %s3
  $region1: #{tpu_custom_call.1} parent=0
    #allocation2 [shape = 'u8[4096]{0}', space=vmem, size = 0x1000, scoped, tag = 'output window, operand 0, single buffered']
    #allocation3 [shape = 's32[1]{0}', space=sflag, size = 0x4, scoped, tag = 'scoped memory for tpu_custom_call.1']
    %7 = vsyncpa [#allocation3], 0
    // Predicated region
    $region2: #{tpu_custom_call.1} parent=1 // pred_check
      _
    $region3: #{tpu_custom_call.1} parent=1 // pred_check_branch
      %9 = sbr.rel (0) target = $region5
    $region4: #{tpu_custom_call.1} parent=1 // pred_region
      _
    $region5: #{tpu_custom_call.1} parent=1 // pred_fallthru
      _
    // Predicated region
    $region6: #{tpu_custom_call.1} parent=1 // pred_check
      _
    $region7: #{tpu_custom_call.1} parent=1 // pred_check_branch
      %11 = sbr.rel (0) target = $region9
    $region8: #{tpu_custom_call.1} parent=1 // pred_region
      _
    $region9: #{tpu_custom_call.1} parent=1 // pred_fallthru
      _
    %v12 = vld [vmem:[%s0] sm:$0xff]
    %v13 = vld [vmem:[%s1] sm:$0xff]
    %vm14 = vcmask 261120
    %v15 = vsel %vm14, %v12, -inf
    %16 = vmax.xlane.f32.xlu0 %v15
    %v17 = vpop.xlane.xlu0 %16
    %v18 = vsub.f32 %v12, %v17
    %v19 = vmul.f32 %v18, 1.442695
    %v20 = vpow.pop %v19
    %v21 = vsel %vm14, %v20, 0.0
    %22 = vadd.xlane.f32.xlu0 %v21
    %v23 = vpop.xlane.xlu0 %22
    %v24 = vlaneseq
    %v25 = vand.u32 %v24, 127
    %26 = vset.pattern.permute.xlu0 0
    %27 = vperm.xlu0 %26, %v13
    %v28 = vpop.permute.xlu0 %27
    %vm29 = vcmp.eq.s32.totalorder %v25, %v28
    %v30 = vsel %vm29, %v12, 0.0
    %v31 = vsel %vm14, %v30, 0.0
    %32 = vadd.xlane.f32.xlu0 %v31
    %v33 = vpop.xlane.xlu0 %32
    %v34 = vsel %vm29, %v20, 0.0
    %v35 = vsel %vm14, %v34, 0.0
    %36 = vadd.xlane.f32.xlu0 %v35
    %v37 = vpop.xlane.xlu0 %36
    %v38 = vlog2.pop %v23
    %v39 = vmul.f32 %v38, 0.6931472
    %v40 = vadd.f32 %v39, %v17
    %v41 = vsub.f32 %v40, %v33
    %v42 = vrcp.pop %v23
    %v43 = vmul.f32 %v37, %v42
    %v44 = vsub.f32 1.0, %v43
    %v45 = vmax.f32 %v44, 0.0
    %v46 = vmul.f32 %v45, %v45
    %v47 = vmul.f32 %v46, %v41
    %s48 = smul.u32 0, 8
    %v49 = vlaneseq
    %v50 = vshrl.u32 %v49, 7
    %v51 = vstv %s48
    %v52 = vadd.s32 %v51, %v50
    %vm53 = vcmp.lt.s32.totalorder %v52, 8
    %v54 = vsel %vm53, %v47, 0.0
    %vm55 = vcmask 7168
    %v56 = vsel %vm55, %v54, 0.0
    %57 = vadd.xlane.f32.xlu0 %v56
    %v58 = vpop.xlane.xlu0 %57
    %v59 = vrot.slane %v58, 4
    %v60 = vadd.f32 %v58, %v59
    %v61 = vrot.slane %v60, 2
    %v62 = vadd.f32 %v60, %v61
    %v63 = vrot.slane %v62, 1
    %v64 = vadd.f32 %v62, %v63
    %s65 = vtos %v64
    %v66 = vstv %s65
    %67 = vst [vmem:[#allocation2] sm:$0xff] %v66
    // Predicated region
    $region10: #{tpu_custom_call.1} parent=1 // pred_check
      _
    $region11: #{tpu_custom_call.1} parent=1 // pred_check_branch
      %69 = sbr.rel (0) target = $region13
    $region12: #{tpu_custom_call.1} parent=1 // pred_region
      %s71 = ssub.s32 128, 128
      %72 = vsyncadd [#allocation3], %s71
      %s74 = sshll.u32 [#allocation2], 4
      %s75 = int_to_ptr.vmem [resolvable:$true] %s74
      %77 = dma.vmem_to_hbm [thread:$0]  %s75, 128, %s2, [#allocation3]
    $region13: #{tpu_custom_call.1} parent=1 // pred_fallthru
      _
    // Predicated region
    $region14: #{tpu_custom_call.1} parent=1 // pred_check
      _
    $region15: #{tpu_custom_call.1} parent=1 // pred_check_branch
      %79 = sbr.rel (0) target = $region17
    $region16: #{tpu_custom_call.1} parent=1 // pred_region
      %80 = dma.done [#allocation3], 128
    $region17: #{tpu_custom_call.1} parent=1 // pred_fallthru
      _
    %81 = vsyncpa [#allocation3], 1

</llo_original>
